<compile_context>
chip_gen: v6e
topology: v6e:2x2x1
jax: 0.10.0
libtpu: 0.0.40
codegen_flags: <defaults>
</compile_context>

<pallas_src>
import jax
import jax.numpy as jnp
from jax.experimental import pallas as pl
from jax.experimental.pallas import tpu as pltpu


# ----------------------------------------------------------------------------
# Pallas kernel (channel-major):
#   out_cm = x_cm + relu( XW_cm @ Ahat^T + b_cm )
# ----------------------------------------------------------------------------
def gcn_resblock_kernel(xw_ref, adj_ref, b_ref, xres_ref, o_ref):
    k = pl.program_id(1)                 # reduction tile over adjacency rows

    @pl.when(k == 0)
    def _init():
        o_ref[...] = jnp.zeros_like(o_ref)

    # aggregation on the MXU: (C, tk) @ (tk, tn) -> (C, tn), f32 accumulate
    o_ref[...] += jnp.dot(xw_ref[...], adj_ref[...],
                          preferred_element_type=jnp.float32)

    @pl.when(k == pl.num_programs(1) - 1)
    def _finalize():
        fx = jnp.maximum(o_ref[...] + b_ref[...], 0.0)   # bias + ReLU (VPU)
        o_ref[...] = xres_ref[...] + fx                  # residual add, in place


# ----------------------------------------------------------------------------
# Wrapper
# ----------------------------------------------------------------------------
def _round_up(x, m):
    return ((x + m - 1) // m) * m


def select_tile(n, max_tile=2048):
    """Node-tile size: multiple of 128, <= max_tile, and >= 2 column tiles
    whenever possible so the parallel j axis feeds both v7x TensorCores."""
    np_min = _round_up(n, 128)
    if np_min <= 128:
        return 128
    return max(128, min(max_tile, _round_up(np_min // 2, 128)))


def prepare_adjacency(adj, tile, adj_dtype=jnp.bfloat16):
    """Graph-static preprocessing: do ONCE per graph and reuse across layers /
    steps.  Pads to a multiple of `tile`, transposes to the channel-major
    convention and casts to the streaming dtype.  adj_cm = Ahat^T (exact for
    any Ahat; a numerical no-op for undirected graphs where Ahat is symmetric)."""
    n = adj.shape[0]
    npad = _round_up(n, tile)
    return jnp.zeros((npad, npad), adj_dtype).at[:n, :n].set(adj.T.astype(adj_dtype))


def iresgnn_block_forward(x, adj_cm, w_t, b, *, tile):
    """x: (N, C) node features; adj_cm: (Np, Np) prepared Ahat^T (see
    prepare_adjacency); w_t: (C, C) spectral-normalized weight applied as
    x @ w_t; b: (1, C) bias.  Returns (N, C) f32:  x + relu(Ahat @ (x@w_t) + b).

    Note: XW and Ahat are streamed in adj_cm.dtype (bf16 by default); the
    accumulation is f32."""
    N, C = x.shape
    Np = adj_cm.shape[0]
    assert Np % tile == 0 and Np >= N
    nb = Np // tile
    adj_dtype = adj_cm.dtype

    # --- per-call glue (cheap, O(N*C)): projection + channel-major padding ---
    xw = jnp.dot(x.astype(jnp.float32), w_t.astype(jnp.float32),
                 precision=jax.lax.Precision.HIGHEST)               # (N, C)
    xw_cm = jnp.zeros((C, Np), adj_dtype).at[:, :N].set(xw.T.astype(adj_dtype))
    x_cm = jnp.zeros((C, Np), jnp.float32).at[:, :N].set(x.T.astype(jnp.float32))
    b_cm = b.reshape(C, 1).astype(jnp.float32)

    # explicit VMEM budget: the v5e scoped default is only 16 MiB, so raise it
    # enough for the double-buffered adjacency tiles, with headroom; cap well
    # below v7x's 64 MiB physical VMEM.
    itemsize = jnp.dtype(adj_dtype).itemsize
    vmem_need = (2 * tile * tile * itemsize            # adj double buffer
                 + 2 * C * tile * (itemsize + 4 + 4)   # xw + residual + out
                 + 8 * C * 128)                        # bias + slack
    vmem_limit = int(min(max(32 * 1024 * 1024, int(1.5 * vmem_need)),
                         56 * 1024 * 1024))

    grid_spec = pltpu.PrefetchScalarGridSpec(
        num_scalar_prefetch=0,
        grid=(nb, nb),                                        # (j, k); k last
        in_specs=[
            pl.BlockSpec((C, tile), lambda j, k: (0, k)),     # XW^T k-slice
            pl.BlockSpec((tile, tile), lambda j, k: (k, j)),  # Ahat^T tile
            pl.BlockSpec((C, 1), lambda j, k: (0, 0)),        # bias (resident)
            pl.BlockSpec((C, tile), lambda j, k: (0, j)),     # residual (per j)
        ],
        out_specs=pl.BlockSpec((C, tile), lambda j, k: (0, j)),
    )

    out_cm = pl.pallas_call(
        gcn_resblock_kernel,
        out_shape=jax.ShapeDtypeStruct((C, Np), jnp.float32),
        grid_spec=grid_spec,
        compiler_params=pltpu.CompilerParams(
            dimension_semantics=("parallel", "arbitrary"),
            vmem_limit_bytes=vmem_limit),
    )(xw_cm, adj_cm, b_cm, x_cm)

    return out_cm[:, :N].T


# ----------------------------------------------------------------------------
# Glue: parameter setup (spectral norm) and dense GCN normalization
# ----------------------------------------------------------------------------
def spectral_normalize(w, coeff=0.9, n_iters=50):
    """i-ResNet style spectral normalization: W <- W / max(1, sigma(W)/coeff)."""
    u = jnp.ones((w.shape[0],), jnp.float32) / jnp.sqrt(w.shape[0])
    v = jnp.zeros((w.shape[1],), jnp.float32)
    for _ in range(n_iters):
        v = w.T @ u
        v = v / (jnp.linalg.norm(v) + 1e-12)
        u = w @ v
        u = u / (jnp.linalg.norm(u) + 1e-12)
    sigma = u @ (w @ v)
    factor = jnp.maximum(1.0, sigma / coeff)
    return w / factor


def build_gcn_adjacency(edge_index, num_nodes):
    """Dense Ahat = D^-1/2 (A + I) D^-1/2 (torch_geometric gcn_norm style;
    duplicate edges accumulate like scatter-add)."""
    row, col = edge_index[0], edge_index[1]          # edge row -> col
    a = jnp.zeros((num_nodes, num_nodes), jnp.float32)
    a = a.at[col, row].add(1.0)                      # A[target, source] += 1
    # TODO(synk): PyG's add_remaining_self_loops keeps pre-existing self-loop
    # weights instead of adding 1 on top; differs only if the input graph
    # already contains explicit self loops.
    a = a + jnp.eye(num_nodes, dtype=jnp.float32)
    deg = a.sum(axis=1)
    dinv = jnp.where(deg > 0, 1.0 / jnp.sqrt(deg), 0.0)
    return dinv[:, None] * a * dinv[None, :]


# ----------------------------------------------------------------------------
if __name__ == "__main__":
    key = jax.random.PRNGKey(0)
    N = 200           # number of graph nodes (wrapper pads to 256)
    C = 32            # in_channels == out_channels (residual block)
    coeff = 0.9       # args.coeff for spectral norm

    k_x, k_w, k_e = jax.random.split(key, 3)

    # node features (N, C)
    x = jax.random.normal(k_x, (N, C), dtype=jnp.float32)

    # deterministic graph: ring edges (both directions) + random extra edges
    ring_src = jnp.arange(N)
    ring_dst = (ring_src + 1) % N
    extra_src = jax.random.randint(k_e, (2 * N,), 0, N)
    extra_dst = jnp.roll(extra_src, 7)
    src = jnp.concatenate([ring_src, ring_dst, extra_src])
    dst = jnp.concatenate([ring_dst, ring_src, extra_dst])
    edge_index = jnp.stack([src, dst], axis=0)        # (2, E)

    # GCNConv linear weight (out, in) glorot init; bias zeros (GCNConv default)
    limit = jnp.sqrt(6.0 / (C + C))
    w = jax.random.uniform(k_w, (C, C), minval=-limit, maxval=limit,
                           dtype=jnp.float32)
    w = spectral_normalize(w, coeff=coeff)            # spectral_norm_gnn('weight')
    w_t = w.T                                         # applied as x @ W^T
    b = jnp.zeros((1, C), dtype=jnp.float32)

    adj = build_gcn_adjacency(edge_index, N)          # (N, N) normalized adjacency

    # tile=128 for this 200-node example -> exercises the 2x2 tiled grid, the
    # padding path, the resident-output k-accumulation and both j-tiles.
    tile = select_tile(N)
    adj_cm = prepare_adjacency(adj, tile, adj_dtype=jnp.bfloat16)   # graph-static, cache it

    out = iresgnn_block_forward(x, adj_cm, w_t, b, tile=tile)
    out = jax.block_until_ready(out)

    # plain-JAX f32 reference for the same forward
    ref = x + jnp.maximum(
        jnp.dot(adj, jnp.dot(x, w_t, precision=jax.lax.Precision.HIGHEST),
                precision=jax.lax.Precision.HIGHEST) + b, 0.0)
    assert out.shape == (N, C)
    # bf16 adjacency / activation streaming (f32 accumulate) -> relaxed tolerance
    max_err = float(jnp.max(jnp.abs(out - ref)))
    assert jnp.allclose(out, ref, atol=1.5e-2, rtol=1.5e-2), \
        f"mismatch vs reference (max abs err {max_err})"

    print("KERNEL_OK")
</pallas_src>

<mosaic_0001>
module attributes {stable_mosaic.version = 11 : i64} {
  func.func @gcn_resblock_kernel(%arg0: i32, %arg1: i32, %arg2: memref<32x128xbf16, #tpu.memory_space<vmem>>, %arg3: memref<128x128xbf16, #tpu.memory_space<vmem>>, %arg4: memref<32x1xf32, #tpu.memory_space<vmem>>, %arg5: memref<32x128xf32, #tpu.memory_space<vmem>>, %arg6: memref<32x128xf32, #tpu.memory_space<vmem>>) attributes {dimension_semantics = [#tpu.dimension_semantics<parallel>, #tpu.dimension_semantics<arbitrary>], iteration_bounds = array<i64: 2, 2>, scalar_prefetch = 0 : i64, scratch_operands = 0 : i64, tpu.core_type = #tpu.core_type<tc>, window_params = [{transform_indices = @transform_0, window_bounds = array<i64: 32, 128>}, {transform_indices = @transform_1, window_bounds = array<i64: 128, 128>}, {pipeline_mode = #tpu.pipeline_mode<synchronous>, transform_indices = @transform_2, window_bounds = array<i64: 32, 1>}, {transform_indices = @transform_3, window_bounds = array<i64: 32, 128>}, {transform_indices = @transform_4, window_bounds = array<i64: 32, 128>}]} {
    %c0_i32 = arith.constant 0 : i32
    %0 = arith.cmpi eq, %arg1, %c0_i32 : i32
    %1 = arith.extui %0 : i1 to i32
    %c0_i32_0 = arith.constant 0 : i32
    %2 = arith.cmpi ne, %1, %c0_i32_0 : i32
    scf.if %2 {
      %cst_9 = arith.constant 0.000000e+00 : f32
      %12 = vector.broadcast %cst_9 : f32 to vector<32x128xf32>
      %c0_10 = arith.constant 0 : index
      %c0_11 = arith.constant 0 : index
      %13 = vector.load %arg6[%c0_10, %c0_11] : memref<32x128xf32, #tpu.memory_space<vmem>>, vector<32x128xf32>
      tpu.vector_store %arg6[%c0_10, %c0_11], %12 {strides = array<i32>} : memref<32x128xf32, #tpu.memory_space<vmem>>, vector<32x128xf32>,
    } else {
    }
    %c0 = arith.constant 0 : index
    %c0_1 = arith.constant 0 : index
    %3 = vector.load %arg6[%c0, %c0_1] : memref<32x128xf32, #tpu.memory_space<vmem>>, vector<32x128xf32>
    %c0_2 = arith.constant 0 : index
    %c0_3 = arith.constant 0 : index
    %4 = vector.load %arg2[%c0_2, %c0_3] : memref<32x128xbf16, #tpu.memory_space<vmem>>, vector<32x128xbf16>
    %c0_4 = arith.constant 0 : index
    %c0_5 = arith.constant 0 : index
    %5 = vector.load %arg3[%c0_4, %c0_5] : memref<128x128xbf16, #tpu.memory_space<vmem>>, vector<128x128xbf16>
    %cst = arith.constant dense<0.000000e+00> : vector<32x128xf32>
    %6 = tpu.matmul %4, %5, %cst {dimension_numbers = #tpu.dot_dimension_numbers<[1], [0], [0], [1], [0, 0, 1, 1], [], []>} : vector<32x128xbf16>, vector<128x128xbf16>, vector<32x128xf32> -> vector<32x128xf32>
    %7 = arith.addf %3, %6 : vector<32x128xf32>
    %c0_6 = arith.constant 0 : index
    %c0_7 = arith.constant 0 : index
    %8 = vector.load %arg6[%c0_6, %c0_7] : memref<32x128xf32, #tpu.memory_space<vmem>>, vector<32x128xf32>
    tpu.vector_store %arg6[%c0_6, %c0_7], %7 {strides = array<i32>} : memref<32x128xf32, #tpu.memory_space<vmem>>, vector<32x128xf32>,
    %c1_i32 = arith.constant 1 : i32
    %9 = arith.cmpi eq, %arg1, %c1_i32 : i32
    %10 = arith.extui %9 : i1 to i32
    %c0_i32_8 = arith.constant 0 : i32
    %11 = arith.cmpi ne, %10, %c0_i32_8 : i32
    scf.if %11 {
      %c0_9 = arith.constant 0 : index
      %c0_10 = arith.constant 0 : index
      %12 = vector.load %arg6[%c0_9, %c0_10] : memref<32x128xf32, #tpu.memory_space<vmem>>, vector<32x128xf32>
      %c0_11 = arith.constant 0 : index
      %c0_12 = arith.constant 0 : index
      %13 = vector.load %arg4[%c0_11, %c0_12] : memref<32x1xf32, #tpu.memory_space<vmem>>, vector<32x1xf32>
      %14 = vector.broadcast %13 : vector<32x1xf32> to vector<32x128xf32>
      %15 = arith.addf %12, %14 : vector<32x128xf32>
      %cst_13 = arith.constant 0.000000e+00 : f32
      %16 = vector.broadcast %cst_13 : f32 to vector<32x128xf32>
      %17 = arith.maximumf %15, %16 : vector<32x128xf32>
      %c0_14 = arith.constant 0 : index
      %c0_15 = arith.constant 0 : index
      %18 = vector.load %arg5[%c0_14, %c0_15] : memref<32x128xf32, #tpu.memory_space<vmem>>, vector<32x128xf32>
      %19 = arith.addf %18, %17 : vector<32x128xf32>
      %c0_16 = arith.constant 0 : index
      %c0_17 = arith.constant 0 : index
      %20 = vector.load %arg6[%c0_16, %c0_17] : memref<32x128xf32, #tpu.memory_space<vmem>>, vector<32x128xf32>
      tpu.vector_store %arg6[%c0_16, %c0_17], %19 {strides = array<i32>} : memref<32x128xf32, #tpu.memory_space<vmem>>, vector<32x128xf32>,
    } else {
    }
    return
  }
  func.func @transform_0(%arg0: i32, %arg1: i32) -> (i32, i32) {
    %c0_i32 = arith.constant 0 : i32
    %c0_i32_0 = arith.constant 0 : i32
    return %c0_i32, %arg1 : i32, i32
  }
  func.func @transform_1(%arg0: i32, %arg1: i32) -> (i32, i32) {
    %c0_i32 = arith.constant 0 : i32
    return %arg1, %arg0 : i32, i32
  }
  func.func @transform_2(%arg0: i32, %arg1: i32) -> (i32, i32) {
    %c0_i32 = arith.constant 0 : i32
    %c0_i32_0 = arith.constant 0 : i32
    %c0_i32_1 = arith.constant 0 : i32
    return %c0_i32, %c0_i32_0 : i32, i32
  }
  func.func @transform_3(%arg0: i32, %arg1: i32) -> (i32, i32) {
    %c0_i32 = arith.constant 0 : i32
    %c0_i32_0 = arith.constant 0 : i32
    return %c0_i32, %arg0 : i32, i32
  }
  func.func @transform_4(%arg0: i32, %arg1: i32) -> (i32, i32) {
    %c0_i32 = arith.constant 0 : i32
    %c0_i32_0 = arith.constant 0 : i32
    return %c0_i32, %arg0 : i32, i32
  }
}

</mosaic_0001>

<llo_original>
// kernel: tpu_custom_call.1
$region0: #{tpu_custom_call.1}
  #allocation0 [shape = 'u32[]', space=smem, size = 0x4, offset = 0x4, fixed_abs, tag = 'smem constant byte address 0x4 - core index']
  #allocation1 [shape = 'u32[144,128]{1,0:T(1,128)}', space=vmem, size = 0x12000, scoped, tag = 'internal scratch']
  %s0 = inlined_call_operand.vmem [shape: bf16[32,256], index: 0, kind: input, shape index: {}]
  %s1 = inlined_call_operand.hbm [shape: bf16[256,256], index: 1, kind: input, shape index: {}]
  %s2 = inlined_call_operand.vmem [shape: f32[32,1], index: 2, kind: input, shape index: {}]
  %s3 = inlined_call_operand.hbm [shape: f32[32,256], index: 3, kind: input, shape index: {}]
  %s4 = inlined_call_operand.hbm [shape: f32[32,256], index: 4, kind: output, shape index: {}]
  %s5 = sld [smem:[#allocation0]]
  $region106: #{tpu_custom_call.1} parent=0
    _
  %s7 = ssub.s32 1, %s5
  %s8 = scalar_select 0, %s7, %s5
  $region1: #{tpu_custom_call.1} parent=0
    #allocation2 [shape = 'u8[16384]{0}', space=vmem, size = 0x4000, scoped, tag = 'input window, operand 0']
    #allocation3 [shape = 'u8[65536]{0}', space=vmem, size = 0x10000, scoped, tag = 'input window, operand 1']
    #allocation4 [shape = 's32[2]{0}', space=sflag, size = 0x8, scoped, tag = 'scoped memory for tpu_custom_call.1']
    #allocation5 [shape = 's32[2]{0}', space=sflag, size = 0x8, scoped, tag = 'scoped memory for tpu_custom_call.1']
    #allocation6 [shape = 'u8[32768]{0}', space=vmem, size = 0x8000, scoped, tag = 'input window, operand 3']
    #allocation7 [shape = 's32[2]{0}', space=sflag, size = 0x8, scoped, tag = 'scoped memory for tpu_custom_call.1']
    #allocation8 [shape = 'u8[32768]{0}', space=vmem, size = 0x8000, scoped, tag = 'output window, operand 0']
    %9 = vsyncpa [#allocation4], 0
    %s10 = scalar_lea.sflag [#allocation4], 1
    %11 = vsyncpa %s10, 0
    %12 = vsyncpa [#allocation7], 0
    %s13 = scalar_lea.sflag [#allocation7], 1
    %14 = vsyncpa %s13, 0
    %15 = vsyncpa [#allocation5], 0
    %s16 = scalar_lea.sflag [#allocation5], 1
    %17 = vsyncpa %s16, 0
    loop: start=0, step=1, limit=6
    $region2: #{tpu_custom_call.1} parent=1 // loop_pre_header
      _
    $region3: #{tpu_custom_call.1} parent=1 // loop_header
      %s19 = sphi 0, %s23
      %p20 = scmp.ge.s32.totalorder %s19, 6
      %s26 = sphi 0, %s38
      %s27 = sphi 0, %s34
      %s28 = sphi 0, %s26
      %s29 = sphi 0, %s27
      %s30 = sphi 0, %s28
      %s31 = sphi 0, %s29
      %s41 = sphi 0, %s43
      %s44 = sphi 0, %s41
      %s45 = sphi 0, %s44
      %s61 = sphi 0, %s45
      %s69 = sphi 0, %s71
      %s72 = sphi 0, %s69
      %s73 = sphi 0, %s72
      %s89 = sphi 0, %s73
      %s93 = sphi 0, %s93
      %s95 = sphi 0, %s93
      %s96 = sphi 0, %s95
      %s110 = sphi 0, %s96
      %s116 = sphi 0, %s118
      %s119 = sphi 0, %s116
      %s120 = sphi 0, %s119
      %s136 = sphi 0, %s120
      %s142 = sphi 0, %s144
      %s145 = sphi 0, %s142
      %s146 = sphi 0, %s145
      %s162 = sphi 0, %s146
    $region4: #{tpu_custom_call.1} parent=1 // loop_header_branch
      %22 = sbr.rel (%p20) target = $region8
    $region5: #{tpu_custom_call.1} parent=1 // loop_body
      %s24 = ssub.s32 %s19, 1
      %s25 = ssub.s32 %s19, 2
      %s32 = sadd.s32 1, %s27
      %p33 = scmp.ge.s32.totalorder %s32, 2
      %s34 = scalar_select %p33, 0, %s32
      %s35 = sadd.s32 1, %s26
      %s36 = scalar_select %p33, %s35, %s26
      %p37 = scmp.ge.s32.totalorder %s36, 2
      %s38 = scalar_select %p37, 0, %s36
      %s39 = ssub.s32 %s27, %s34
      %p40 = scmp.eq.s32.totalorder %s39, 0
      %s42 = sadd.s32 %s41, 1
      %s43 = scalar_select %p40, %s41, %s42
      %p46 = pneg %p40
      %p47 = scmp.eq.s32.totalorder %s19, 3
      %p48 = por %p46, %p47
      %p49 = scmp.ne.s32.totalorder %s41, %s44
      %p50 = scmp.eq.s32.totalorder %s19, 0
      %p51 = por %p49, %p50
      %p52 = scmp.ne.s32.totalorder %s41, %s44
      %p53 = scmp.eq.s32.totalorder %s24, 3
      %p54 = por %p52, %p53
      %p55 = scmp.ne.s32.totalorder %s44, %s45
      %p56 = scmp.eq.s32.totalorder %s24, 0
      %p57 = por %p55, %p56
      %p58 = scmp.ne.s32.totalorder %s44, %s45
      %p59 = scmp.eq.s32.totalorder %s25, 3
      %p60 = por %p58, %p59
      %p62 = scmp.ne.s32.totalorder %s45, %s61
      %p63 = scmp.eq.s32.totalorder %s25, 0
      %p64 = por %p62, %p63
      %s65 = ssub.s32 %s27, %s34
      %s66 = ssub.s32 %s26, %s38
      %s67 = sor.u32 %s65, %s66
      %p68 = scmp.eq.s32.totalorder %s67, 0
      %s70 = sadd.s32 %s69, 1
      %s71 = scalar_select %p68, %s69, %s70
      %p74 = pneg %p68
      %p75 = scmp.eq.s32.totalorder %s19, 3
      %p76 = por %p74, %p75
      %p77 = scmp.ne.s32.totalorder %s69, %s72
      %p78 = scmp.eq.s32.totalorder %s19, 0
      %p79 = por %p77, %p78
      %p80 = scmp.ne.s32.totalorder %s69, %s72
      %p81 = scmp.eq.s32.totalorder %s24, 3
      %p82 = por %p80, %p81
      %p83 = scmp.ne.s32.totalorder %s72, %s73
      %p84 = scmp.eq.s32.totalorder %s24, 0
      %p85 = por %p83, %p84
      %p86 = scmp.ne.s32.totalorder %s72, %s73
      %p87 = scmp.eq.s32.totalorder %s25, 3
      %p88 = por %p86, %p87
      %p90 = scmp.ne.s32.totalorder %s73, %s89
      %p91 = scmp.eq.s32.totalorder %s25, 0
      %p92 = por %p90, %p91
      %s94 = sadd.s32 %s93, 1
      %p97 = scmp.eq.s32.totalorder %s19, 3
      %p98 = scmp.ne.s32.totalorder %s93, %s95
      %p99 = scmp.eq.s32.totalorder %s19, 0
      %p100 = por %p98, %p99
      %p101 = scmp.ne.s32.totalorder %s93, %s95
      %p102 = scmp.eq.s32.totalorder %s24, 3
      %p103 = por %p101, %p102
      %p104 = scmp.ne.s32.totalorder %s95, %s96
      %p105 = scmp.eq.s32.totalorder %s24, 0
      %p106 = por %p104, %p105
      %p107 = scmp.ne.s32.totalorder %s95, %s96
      %p108 = scmp.eq.s32.totalorder %s25, 3
      %p109 = por %p107, %p108
      %p111 = scmp.ne.s32.totalorder %s96, %s110
      %p112 = scmp.eq.s32.totalorder %s25, 0
      %p113 = por %p111, %p112
      %s114 = ssub.s32 %s26, %s38
      %p115 = scmp.eq.s32.totalorder %s114, 0
      %s117 = sadd.s32 %s116, 1
      %s118 = scalar_select %p115, %s116, %s117
      %p121 = pneg %p115
      %p122 = scmp.eq.s32.totalorder %s19, 3
      %p123 = por %p121, %p122
      %p124 = scmp.ne.s32.totalorder %s116, %s119
      %p125 = scmp.eq.s32.totalorder %s19, 0
      %p126 = por %p124, %p125
      %p127 = scmp.ne.s32.totalorder %s116, %s119
      %p128 = scmp.eq.s32.totalorder %s24, 3
      %p129 = por %p127, %p128
      %p130 = scmp.ne.s32.totalorder %s119, %s120
      %p131 = scmp.eq.s32.totalorder %s24, 0
      %p132 = por %p130, %p131
      %p133 = scmp.ne.s32.totalorder %s119, %s120
      %p134 = scmp.eq.s32.totalorder %s25, 3
      %p135 = por %p133, %p134
      %p137 = scmp.ne.s32.totalorder %s120, %s136
      %p138 = scmp.eq.s32.totalorder %s25, 0
      %p139 = por %p137, %p138
      %s140 = ssub.s32 %s26, %s38
      %p141 = scmp.eq.s32.totalorder %s140, 0
      %s143 = sadd.s32 %s142, 1
      %s144 = scalar_select %p141, %s142, %s143
      %p147 = pneg %p141
      %p148 = scmp.eq.s32.totalorder %s19, 3
      %p149 = por %p147, %p148
      %p150 = scmp.ne.s32.totalorder %s142, %s145
      %p151 = scmp.eq.s32.totalorder %s19, 0
      %p152 = por %p150, %p151
      %p153 = scmp.ne.s32.totalorder %s142, %s145
      %p154 = scmp.eq.s32.totalorder %s24, 3
      %p155 = por %p153, %p154
      %p156 = scmp.ne.s32.totalorder %s145, %s146
      %p157 = scmp.eq.s32.totalorder %s24, 0
      %p158 = por %p156, %p157
      %p159 = scmp.ne.s32.totalorder %s145, %s146
      %p160 = scmp.eq.s32.totalorder %s25, 3
      %p161 = por %p159, %p160
      %p163 = scmp.ne.s32.totalorder %s146, %s162
      %p164 = scmp.eq.s32.totalorder %s25, 0
      %p165 = por %p163, %p164
      %p166 = scmp.le.s32.totalorder 1, %s19
      %p167 = scmp.lt.s32.totalorder %s19, 5
      %p168 = pnand %p166, %p167
      %p169 = pneg %p168
      // Predicated region
      $region9: #{tpu_custom_call.1} parent=5 // pred_check
        _
      $region10: #{tpu_custom_call.1} parent=5 // pred_check_branch
        %171 = sbr.rel (%p168) target = $region12
      $region11: #{tpu_custom_call.1} parent=5 // pred_region
        %s172 = ssub.s32 %s19, 1
        // Predicated region
        $region13: #{tpu_custom_call.1} parent=11 // pred_check
          %p173 = pneg %p106
        $region14: #{tpu_custom_call.1} parent=11 // pred_check_branch
          %175 = sbr.rel (%p173) target = $region16
        $region15: #{tpu_custom_call.1} parent=11 // pred_region
          _
        $region16: #{tpu_custom_call.1} parent=11 // pred_fallthru
          _
      $region12: #{tpu_custom_call.1} parent=5 // pred_fallthru
        _
      %p176 = scmp.lt.s32.totalorder %s19, 4
      // Predicated region
      $region17: #{tpu_custom_call.1} parent=5 // pred_check
        %p177 = pneg %p176
      $region18: #{tpu_custom_call.1} parent=5 // pred_check_branch
        %179 = sbr.rel (%p177) target = $region20
      $region19: #{tpu_custom_call.1} parent=5 // pred_region
        // Predicated region
        $region21: #{tpu_custom_call.1} parent=19 // pred_check
          %p180 = pneg %p51
        $region22: #{tpu_custom_call.1} parent=19 // pred_check_branch
          %182 = sbr.rel (%p180) target = $region24
        $region23: #{tpu_custom_call.1} parent=19 // pred_region
          %s183 = sand.u32 %s41, 1
          %s184 = sand.u32 %s41, 1
          %s185 = smul.addr %s184, 16
          %s186 = scalar_lea.vmem [#allocation2], %s185
          %s187 = smul.addr %s27, 4
          %s188 = scalar_lea.vmem %s0, %s187
          // Predicated region
          $region25: #{tpu_custom_call.1} parent=23 // pred_check
            _
          $region26: #{tpu_custom_call.1} parent=23 // pred_check_branch
            %190 = sbr.rel (0) target = $region28
          $region27: #{tpu_custom_call.1} parent=23 // pred_region
            // Predicated region
            $region29: #{tpu_custom_call.1} parent=27 // pred_check
              _
            $region30: #{tpu_custom_call.1} parent=27 // pred_check_branch
              %192 = sbr.rel target = $region32
            $region31: #{tpu_custom_call.1} parent=27 // pred_region
              // Predicated region
              $region44: #{tpu_custom_call.1} parent=31 // pred_check
                _
              $region45: #{tpu_custom_call.1} parent=31 // pred_check_branch
                %214 = sbr.rel (0) target = $region47
              $region46: #{tpu_custom_call.1} parent=31 // pred_region
                loop: start=0, step=1, limit=1
                $region48: #{tpu_custom_call.1} parent=46 // loop_pre_header
                  _
                $region49: #{tpu_custom_call.1} parent=46 // loop_header
                  %s216 = sphi 0, %s220
                  %p217 = scmp.ge.s32.totalorder %s216, 1
                  %s221 = sphi %s188, %s188
                  %s222 = sphi %s186, %s186
                $region50: #{tpu_custom_call.1} parent=46 // loop_header_branch
                  %219 = sbr.rel (%p217) target = $region54
                $region51: #{tpu_custom_call.1} parent=46 // loop_body
                  _
                $region52: #{tpu_custom_call.1} parent=46 // loop_footer
                  %s220 = sadd.s32 1, %s216
                $region53: #{tpu_custom_call.1} parent=46 // loop_footer_branch
                  %215 = sbr.rel target = $region49
                $region54: #{tpu_custom_call.1} parent=46 // loop_exit
                  _
                %s224 = ssub.s32 16, 1
                loop: start=0, step=1, limit=1
                $region55: #{tpu_custom_call.1} parent=46 // loop_pre_header
                  _
                $region56: #{tpu_custom_call.1} parent=46 // loop_header
                  %s226 = sphi 0, %s230
                  %p227 = scmp.ge.s32.totalorder %s226, 1
                  %s231 = sphi %s188, %s188
                  %s232 = sphi %s186, %s186
                $region57: #{tpu_custom_call.1} parent=46 // loop_header_branch
                  %229 = sbr.rel (%p227) target = $region61
                $region58: #{tpu_custom_call.1} parent=46 // loop_body
                  %v233 = vld [vmem:[%s231] sm:%s224]
                  %234 = vst [vmem:[%s232] sm:%s224] %v233
                  %v235 = vld [vmem:[%s231 + $0x8] sm:%s224]
                  %236 = vst [vmem:[%s232 + $0x4] sm:%s224] %v235
                  %v237 = vld [vmem:[%s231 + $0x10] sm:%s224]
                  %238 = vst [vmem:[%s232 + $0x8] sm:%s224] %v237
                  %v239 = vld [vmem:[%s231 + $0x18] sm:%s224]
                  %240 = vst [vmem:[%s232 + $0xc] sm:%s224] %v239
                $region59: #{tpu_custom_call.1} parent=46 // loop_footer
                  %s230 = sadd.s32 1, %s226
                $region60: #{tpu_custom_call.1} parent=46 // loop_footer_branch
                  %225 = sbr.rel target = $region56
                $region61: #{tpu_custom_call.1} parent=46 // loop_exit
                  _
              $region47: #{tpu_custom_call.1} parent=31 // pred_fallthru
                _
            $region32: #{tpu_custom_call.1} parent=27 // pred_fallthru
              _
            // Predicated region
            $region33: #{tpu_custom_call.1} parent=27 // pred_check
              _
            $region34: #{tpu_custom_call.1} parent=27 // pred_check_branch
              %194 = sbr.rel (0) target = $region36
            $region35: #{tpu_custom_call.1} parent=27 // pred_region
              %s196 = ssub.s32 16, 1
              loop: start=0, step=1, limit=1
              $region37: #{tpu_custom_call.1} parent=35 // loop_pre_header
                _
              $region38: #{tpu_custom_call.1} parent=35 // loop_header
                %s198 = sphi 0, %s202
                %p199 = scmp.ge.s32.totalorder %s198, 1
                %s203 = sphi %s188, %s188
                %s204 = sphi %s186, %s186
              $region39: #{tpu_custom_call.1} parent=35 // loop_header_branch
                %201 = sbr.rel (%p199) target = $region43
              $region40: #{tpu_custom_call.1} parent=35 // loop_body
                %v205 = vld [vmem:[%s203] sm:%s196]
                %206 = vst [vmem:[%s204] sm:%s196] %v205
                %v207 = vld [vmem:[%s203 + $0x8] sm:%s196]
                %208 = vst [vmem:[%s204 + $0x4] sm:%s196] %v207
                %v209 = vld [vmem:[%s203 + $0x10] sm:%s196]
                %210 = vst [vmem:[%s204 + $0x8] sm:%s196] %v209
                %v211 = vld [vmem:[%s203 + $0x18] sm:%s196]
                %212 = vst [vmem:[%s204 + $0xc] sm:%s196] %v211
              $region41: #{tpu_custom_call.1} parent=35 // loop_footer
                %s202 = sadd.s32 1, %s198
              $region42: #{tpu_custom_call.1} parent=35 // loop_footer_branch
                %197 = sbr.rel target = $region38
              $region43: #{tpu_custom_call.1} parent=35 // loop_exit
                _
            $region36: #{tpu_custom_call.1} parent=27 // pred_fallthru
              _
          $region28: #{tpu_custom_call.1} parent=23 // pred_fallthru
            _
          %241 = vnop
        $region24: #{tpu_custom_call.1} parent=19 // pred_fallthru
          _
        // Predicated region
        $region62: #{tpu_custom_call.1} parent=19 // pred_check
          %p242 = pneg %p79
        $region63: #{tpu_custom_call.1} parent=19 // pred_check_branch
          %244 = sbr.rel (%p242) target = $region65
        $region64: #{tpu_custom_call.1} parent=19 // pred_region
          %s245 = sand.u32 %s69, 1
          %s246 = scalar_lea.sflag [#allocation4], %s245
          %s247 = sand.u32 %s69, 1
          %s248 = smul.addr %s247, 64
          %s249 = scalar_lea.vmem [#allocation3], %s248
          %s250 = smul.u32 16, %s27
          %s252 = ssub.s32 1024, 1024
          %253 = vsyncadd %s246, %s252
          %s254 = smul.addr %s250, 2
          %s255 = sadd.s32 %s26, %s254
          %s256 = smul.addr %s255, 64
          %s257 = scalar_lea.hbm %s1, %s256
          %s258 = sshll.u32 %s249, 4
          %s259 = int_to_ptr.vmem [resolvable:$true] %s258
          %264 = dma.hbm_to_vmem [thread:$0]  %s257, 1024, %s259, %s246, 128, 64, 4
        $region65: #{tpu_custom_call.1} parent=19 // pred_fallthru
          _
        // Predicated region
        $region66: #{tpu_custom_call.1} parent=19 // pred_check
          %p265 = pneg %p126
        $region67: #{tpu_custom_call.1} parent=19 // pred_check_branch
          %267 = sbr.rel (%p265) target = $region69
        $region68: #{tpu_custom_call.1} parent=19 // pred_region
          %s268 = sand.u32 %s116, 1
          %s269 = scalar_lea.sflag [#allocation7], %s268
          %s270 = sand.u32 %s116, 1
          %s271 = smul.addr %s270, 32
          %s272 = scalar_lea.vmem [#allocation6], %s271
          %s274 = ssub.s32 512, 512
          %275 = vsyncadd %s269, %s274
          %s276 = smul.addr %s26, 128
          %s277 = scalar_lea.hbm %s3, %s276
          %s278 = sshll.u32 %s272, 4
          %s279 = int_to_ptr.vmem [resolvable:$true] %s278
          %284 = dma.hbm_to_vmem [thread:$0]  %s277, 512, %s279, %s269, 256, 128, 8
        $region69: #{tpu_custom_call.1} parent=19 // pred_fallthru
          _
      $region20: #{tpu_custom_call.1} parent=5 // pred_fallthru
        _
      %p285 = scmp.le.s32.totalorder 1, %s19
      %p286 = scmp.lt.s32.totalorder %s19, 5
      %p287 = pnand %p285, %p286
      %p288 = pneg %p287
      // Predicated region
      $region70: #{tpu_custom_call.1} parent=5 // pred_check
        _
      $region71: #{tpu_custom_call.1} parent=5 // pred_check_branch
        %290 = sbr.rel (%p287) target = $region73
      $region72: #{tpu_custom_call.1} parent=5 // pred_region
        %s291 = ssub.s32 %s19, 1
        %s292 = sand.u32 %s44, 1
        %s293 = sand.u32 %s44, 1
        %s294 = smul.addr %s293, 16
        %s295 = scalar_lea.vmem [#allocation2], %s294
        // Predicated region
        $region74: #{tpu_custom_call.1} parent=72 // pred_check
          %p296 = pneg %p57
        $region75: #{tpu_custom_call.1} parent=72 // pred_check_branch
          %298 = sbr.rel (%p296) target = $region77
        $region76: #{tpu_custom_call.1} parent=72 // pred_region
          _
        $region77: #{tpu_custom_call.1} parent=72 // pred_fallthru
          _
        %s299 = sand.u32 %s72, 1
        %s300 = scalar_lea.sflag [#allocation4], %s299
        %s301 = sand.u32 %s72, 1
        %s302 = smul.addr %s301, 64
        %s303 = scalar_lea.vmem [#allocation3], %s302
        // Predicated region
        $region78: #{tpu_custom_call.1} parent=72 // pred_check
          %p304 = pneg %p85
        $region79: #{tpu_custom_call.1} parent=72 // pred_check_branch
          %306 = sbr.rel (%p304) target = $region81
        $region80: #{tpu_custom_call.1} parent=72 // pred_region
          %307 = dma.done %s300, 1024
        $region81: #{tpu_custom_call.1} parent=72 // pred_fallthru
          _
        %s308 = sand.u32 %s119, 1
        %s309 = scalar_lea.sflag [#allocation7], %s308
        %s310 = sand.u32 %s119, 1
        %s311 = smul.addr %s310, 32
        %s312 = scalar_lea.vmem [#allocation6], %s311
        // Predicated region
        $region82: #{tpu_custom_call.1} parent=72 // pred_check
          %p313 = pneg %p132
        $region83: #{tpu_custom_call.1} parent=72 // pred_check_branch
          %315 = sbr.rel (%p313) target = $region85
        $region84: #{tpu_custom_call.1} parent=72 // pred_region
          %316 = dma.done %s309, 512
        $region85: #{tpu_custom_call.1} parent=72 // pred_fallthru
          _
        %s317 = sand.u32 %s44, 1
        %s318 = sand.u32 %s44, 1
        %s319 = smul.addr %s318, 16
        %s320 = scalar_lea.vmem [#allocation2], %s319
        %p321 = pneg %p57
        %p322 = pneg %p54
        %s323 = sand.u32 %s72, 1
        %s324 = scalar_lea.sflag [#allocation4], %s323
        %s325 = sand.u32 %s72, 1
        %s326 = smul.addr %s325, 64
        %s327 = scalar_lea.vmem [#allocation3], %s326
        %p328 = pneg %p85
        %p329 = pneg %p82
        %p330 = pneg %p106
        %p331 = pneg %p103
        %s332 = sand.u32 %s119, 1
        %s333 = scalar_lea.sflag [#allocation7], %s332
        %s334 = sand.u32 %s119, 1
        %s335 = smul.addr %s334, 32
        %s336 = scalar_lea.vmem [#allocation6], %s335
        %p337 = pneg %p132
        %p338 = pneg %p129
        %p339 = pneg %p158
        %p340 = pneg %p155
        %s341 = sand.u32 %s145, 1
        %s342 = scalar_lea.sflag [#allocation5], %s341
        %s343 = sand.u32 %s145, 1
        %s344 = smul.addr %s343, 32
        %s345 = scalar_lea.vmem [#allocation8], %s344
        %s346 = smul.u32 16, %s29
        %p348 = scmp.eq.s32.totalorder %s29, 0
        // Predicated region
        $region86: #{tpu_custom_call.1} parent=72 // pred_check
          %p349 = pneg %p348
        $region87: #{tpu_custom_call.1} parent=72 // pred_check_branch
          %351 = sbr.rel (%p349) target = $region89
        $region88: #{tpu_custom_call.1} parent=72 // pred_region
          %352 = vst [vmem:[%s345] sm:$0xff] 0.0
          %353 = vst [vmem:[%s345 + $0x8] sm:$0xff] 0.0
          %354 = vst [vmem:[%s345 + $0x10] sm:$0xff] 0.0
          %355 = vst [vmem:[%s345 + $0x18] sm:$0xff] 0.0
        $region89: #{tpu_custom_call.1} parent=72 // pred_fallthru
          _
        %v356 = vld [vmem:[%s345] sm:$0xff]
        %v357 = vld [vmem:[%s345 + $0x8] sm:$0xff]
        %v358 = vld [vmem:[%s345 + $0x10] sm:$0xff]
        %v359 = vld [vmem:[%s345 + $0x18] sm:$0xff]
        %v360 = vld [vmem:[%s295] sm:$0xf]
        %v361 = vld [vmem:[%s295 + $0x4] sm:$0xf]
        %v362 = vld [vmem:[%s295 + $0x8] sm:$0xf]
        %v363 = vld [vmem:[%s295 + $0xc] sm:$0xf]
        %v364 = vld [vmem:[%s303] sm:$0xf]
        %v365 = vld [vmem:[%s303 + $0x4] sm:$0xf]
        %v366 = vld [vmem:[%s303 + $0x8] sm:$0xf]
        %v367 = vld [vmem:[%s303 + $0xc] sm:$0xf]
        %v368 = vld [vmem:[%s303 + $0x10] sm:$0xf]
        %v369 = vld [vmem:[%s303 + $0x14] sm:$0xf]
        %v370 = vld [vmem:[%s303 + $0x18] sm:$0xf]
        %v371 = vld [vmem:[%s303 + $0x1c] sm:$0xf]
        %v372 = vld [vmem:[%s303 + $0x20] sm:$0xf]
        %v373 = vld [vmem:[%s303 + $0x24] sm:$0xf]
        %v374 = vld [vmem:[%s303 + $0x28] sm:$0xf]
        %v375 = vld [vmem:[%s303 + $0x2c] sm:$0xf]
        %v376 = vld [vmem:[%s303 + $0x30] sm:$0xf]
        %v377 = vld [vmem:[%s303 + $0x34] sm:$0xf]
        %v378 = vld [vmem:[%s303 + $0x38] sm:$0xf]
        %v379 = vld [vmem:[%s303 + $0x3c] sm:$0xf]
        %v384 = vunpack.c.l.b16 %v360
        %v385 = vunpack.c.l.b16 %v361
        %v386 = vunpack.c.l.b16 %v362
        %v387 = vunpack.c.l.b16 %v363
        %v388 = vpack.c.b16 %v385, %v384
        %v389 = vpack.c.b16 %v387, %v386
        %v408 = vunpack.c.l.b16 %v364
        %v409 = vunpack.c.l.b16 %v365
        %v410 = vunpack.c.l.b16 %v366
        %v411 = vunpack.c.l.b16 %v367
        %v412 = vunpack.c.l.b16 %v368
        %v413 = vunpack.c.l.b16 %v369
        %v414 = vunpack.c.l.b16 %v370
        %v415 = vunpack.c.l.b16 %v371
        %v416 = vunpack.c.l.b16 %v372
        %v417 = vunpack.c.l.b16 %v373
        %v418 = vunpack.c.l.b16 %v374
        %v419 = vunpack.c.l.b16 %v375
        %v420 = vunpack.c.l.b16 %v376
        %v421 = vunpack.c.l.b16 %v377
        %v422 = vunpack.c.l.b16 %v378
        %v423 = vunpack.c.l.b16 %v379
        %v424 = vpack.c.b16 %v409, %v408
        %v425 = vpack.c.b16 %v411, %v410
        %v426 = vpack.c.b16 %v413, %v412
        %v427 = vpack.c.b16 %v415, %v414
        %v428 = vpack.c.b16 %v417, %v416
        %v429 = vpack.c.b16 %v419, %v418
        %v430 = vpack.c.b16 %v421, %v420
        %v431 = vpack.c.b16 %v423, %v422
        %440 = vmatprep.subr.bf16.mxu0 0
        %441 = vmatpush1.bf16.msra.mxu0 %v431
        %442 = vmatprep.subr.bf16.mxu0 0
        %443 = vmatpush1.bf16.msra.mxu0 %v430
        %444 = vmatprep.subr.bf16.mxu0 0
        %445 = vmatpush1.bf16.msra.mxu0 %v429
        %446 = vmatprep.subr.bf16.mxu0 0
        %447 = vmatpush1.bf16.msra.mxu0 %v428
        %448 = vmatprep.subr.bf16.mxu0 0
        %449 = vmatpush1.bf16.msra.mxu0 %v427
        %450 = vmatprep.subr.bf16.mxu0 0
        %451 = vmatpush1.bf16.msra.mxu0 %v426
        %452 = vmatprep.subr.bf16.mxu0 0
        %453 = vmatpush1.bf16.msra.mxu0 %v425
        %454 = vmatprep.subr.bf16.mxu0 0
        %455 = vmatpush1.bf16.msra.mxu0 %v424
        %456 = vmatprep.subr.bf16.mxu0 0
        %457 = vmatpush2.bf16.msra.mxu0 0
        %458 = vmatprep.subr.bf16.mxu0 0
        %459 = vmatpush2.bf16.msra.mxu0 0
        %460 = vmatprep.subr.bf16.mxu0 0
        %461 = vmatpush2.bf16.msra.mxu0 0
        %462 = vmatprep.subr.bf16.mxu0 0
        %463 = vmatpush2.bf16.msra.mxu0 0
        %464 = vmatprep.subr.bf16.mxu0 0
        %465 = vmatpush2.bf16.msra.mxu0 0
        %466 = vmatprep.subr.bf16.mxu0 0
        %467 = vmatpush2.bf16.msra.mxu0 0
        %468 = vmatprep.subr.bf16.mxu0 0
        %469 = vmatpush2.bf16.msra.mxu0 0
        %470 = vmatprep.subr.bf16.mxu0 0
        %471 = vmatpush2.bf16.msra.mxu0 0
        %472 = vmatprep.mubr.bf16.mxu0 0
        %473 = vmatmul.mubr.bf16.gmra.mxu0 %v388
        %v474 = vpop.f32.mrf.mxu0
        %v475 = vadd.f32 0.0, %v474
        %v476 = vpop.f32.mrf.mxu0
        %v477 = vpop.f32.mrf.mxu0
        %v478 = vadd.f32 0.0, %v477
        %v479 = vpop.f32.mrf.mxu0
        %480 = vmatprep.mubr.bf16.mxu0 0
        %481 = vmatmul.mubr.bf16.gmra.mxu0 %v389
        %v482 = vpop.f32.mrf.mxu0
        %v483 = vadd.f32 0.0, %v482
        %v484 = vpop.f32.mrf.mxu0
        %v485 = vpop.f32.mrf.mxu0
        %v486 = vadd.f32 0.0, %v485
        %v487 = vpop.f32.mrf.mxu0
        %488 = vdwg.mxu0
        %v489 = vadd.f32 %v356, %v475
        %v490 = vadd.f32 %v357, %v478
        %v491 = vadd.f32 %v358, %v483
        %v492 = vadd.f32 %v359, %v486
        %493 = vst [vmem:[%s345] sm:$0xff] %v489
        %494 = vst [vmem:[%s345 + $0x8] sm:$0xff] %v490
        %495 = vst [vmem:[%s345 + $0x10] sm:$0xff] %v491
        %496 = vst [vmem:[%s345 + $0x18] sm:$0xff] %v492
        %p497 = scmp.eq.s32.totalorder %s29, 1
        // Predicated region
        $region90: #{tpu_custom_call.1} parent=72 // pred_check
          %p498 = pneg %p497
        $region91: #{tpu_custom_call.1} parent=72 // pred_check_branch
          %500 = sbr.rel (%p498) target = $region93
        $region92: #{tpu_custom_call.1} parent=72 // pred_region
          %v501 = vld [vmem:[%s345] sm:$0xff]
          %v502 = vld [vmem:[%s345 + $0x8] sm:$0xff]
          %v503 = vld [vmem:[%s345 + $0x10] sm:$0xff]
          %v504 = vld [vmem:[%s345 + $0x18] sm:$0xff]
          %v505 = vld [vmem:[%s2] sm:$0xff]
          %v506 = vld [vmem:[%s2 + $0x8] sm:$0xff]
          %v507 = vld [vmem:[%s2 + $0x10] sm:$0xff]
          %v508 = vld [vmem:[%s2 + $0x18] sm:$0xff]
          %510 = vset.pattern.permute.xlu0 0
          %511 = vperm.xlu0 %510, %v505
          %v512 = vpop.permute.xlu0 %511
          %515 = vset.pattern.permute.xlu0 0
          %516 = vperm.xlu0 %515, %v506
          %v517 = vpop.permute.xlu0 %516
          %520 = vset.pattern.permute.xlu0 0
          %521 = vperm.xlu0 %520, %v507
          %v522 = vpop.permute.xlu0 %521
          %525 = vset.pattern.permute.xlu0 0
          %526 = vperm.xlu0 %525, %v508
          %v527 = vpop.permute.xlu0 %526
          %v529 = vadd.f32 %v501, %v512
          %v530 = vadd.f32 %v502, %v517
          %v531 = vadd.f32 %v503, %v522
          %v532 = vadd.f32 %v504, %v527
          %v533 = vmax.f32 %v529, 0.0
          %v534 = vmax.f32 %v530, 0.0
          %v535 = vmax.f32 %v531, 0.0
          %v536 = vmax.f32 %v532, 0.0
          %v537 = vld [vmem:[%s312] sm:$0xff]
          %v538 = vld [vmem:[%s312 + $0x8] sm:$0xff]
          %v539 = vld [vmem:[%s312 + $0x10] sm:$0xff]
          %v540 = vld [vmem:[%s312 + $0x18] sm:$0xff]
          %v541 = vadd.f32 %v537, %v533
          %v542 = vadd.f32 %v538, %v534
          %v543 = vadd.f32 %v539, %v535
          %v544 = vadd.f32 %v540, %v536
          %545 = vst [vmem:[%s345] sm:$0xff] %v541
          %546 = vst [vmem:[%s345 + $0x8] sm:$0xff] %v542
          %547 = vst [vmem:[%s345 + $0x10] sm:$0xff] %v543
          %548 = vst [vmem:[%s345 + $0x18] sm:$0xff] %v544
        $region93: #{tpu_custom_call.1} parent=72 // pred_fallthru
          _
        %s549 = sand.u32 %s145, 1
        %s550 = scalar_lea.sflag [#allocation5], %s549
        %s551 = sand.u32 %s145, 1
        %s552 = smul.addr %s551, 32
        %s553 = scalar_lea.vmem [#allocation8], %s552
        // Predicated region
        $region94: #{tpu_custom_call.1} parent=72 // pred_check
          %p554 = pneg %p155
        $region95: #{tpu_custom_call.1} parent=72 // pred_check_branch
          %556 = sbr.rel (%p554) target = $region97
        $region96: #{tpu_custom_call.1} parent=72 // pred_region
          %s558 = ssub.s32 512, 512
          %559 = vsyncadd %s550, %s558
          %s560 = smul.addr %s28, 128
          %s561 = scalar_lea.hbm %s4, %s560
          %s562 = sshll.u32 %s553, 4
          %s563 = int_to_ptr.vmem [resolvable:$true] %s562
          %568 = dma.vmem_to_hbm [thread:$0]  %s563, 512, %s561, %s550, 128, 256, 8
        $region97: #{tpu_custom_call.1} parent=72 // pred_fallthru
          _
      $region73: #{tpu_custom_call.1} parent=5 // pred_fallthru
        _
      %p569 = scmp.le.s32.totalorder 2, %s19
      // Predicated region
      $region98: #{tpu_custom_call.1} parent=5 // pred_check
        %p570 = pneg %p569
      $region99: #{tpu_custom_call.1} parent=5 // pred_check_branch
        %572 = sbr.rel (%p570) target = $region101
      $region100: #{tpu_custom_call.1} parent=5 // pred_region
        %s573 = ssub.s32 %s19, 2
        // Predicated region
        $region102: #{tpu_custom_call.1} parent=100 // pred_check
          %p574 = pneg %p161
        $region103: #{tpu_custom_call.1} parent=100 // pred_check_branch
          %576 = sbr.rel (%p574) target = $region105
        $region104: #{tpu_custom_call.1} parent=100 // pred_region
          %s577 = sand.u32 %s146, 1
          %s578 = scalar_lea.sflag [#allocation5], %s577
          %s579 = sand.u32 %s146, 1
          %s580 = smul.addr %s579, 32
          %s581 = scalar_lea.vmem [#allocation8], %s580
          %582 = dma.done %s578, 512
        $region105: #{tpu_custom_call.1} parent=100 // pred_fallthru
          _
      $region101: #{tpu_custom_call.1} parent=5 // pred_fallthru
        _
    $region6: #{tpu_custom_call.1} parent=1 // loop_footer
      %s23 = sadd.s32 1, %s19
    $region7: #{tpu_custom_call.1} parent=1 // loop_footer_branch
      %18 = sbr.rel target = $region3
    $region8: #{tpu_custom_call.1} parent=1 // loop_exit
      _
    %583 = vsyncpa [#allocation4], 1
    %s584 = scalar_lea.sflag [#allocation4], 1
    %585 = vsyncpa %s584, 1
    %586 = vsyncpa [#allocation7], 1
    %s587 = scalar_lea.sflag [#allocation7], 1
    %588 = vsyncpa %s587, 1
    %589 = vsyncpa [#allocation5], 1
    %s590 = scalar_lea.sflag [#allocation5], 1
    %591 = vsyncpa %s590, 1

</llo_original>
